<compile_context>
chip_gen: v7x
topology: tpu7x:2x2x1
jax: 0.10.0
libtpu: 0.0.40
codegen_flags: <defaults>
</compile_context>

<pallas_src>
import functools

import jax
import jax.numpy as jnp
from jax import lax
from jax.experimental import pallas as pl
from jax.experimental.pallas import tpu as pltpu


def _round_up(x, m):
    return ((x + m - 1) // m) * m


def _choose_tile(hw, c, itemsize, tile_hw):
    """Lane-dense spatial tile: multiple of 128, ~1 MiB of logits per step."""
    if tile_hw is not None:
        return max(128, _round_up(int(tile_hw), 128))
    target_bytes = 1 << 20
    t = target_bytes // max(1, c * itemsize)
    t = max(512, min(t, 8192))
    t = (t // 128) * 128
    t = min(t, _round_up(hw, 128))
    return max(t, 128)


def _dice_kernel(pred_ref, tgt_ref, w_ref, out_ref, inter_ref, card_ref,
                 *, eps, ignore_index, hw, tile, mode):
    k = pl.program_id(1)
    nk = pl.num_programs(1)

    @pl.when(k == 0)
    def _init():
        inter_ref[...] = jnp.zeros_like(inter_ref)
        card_ref[...] = jnp.zeros_like(card_ref)

    # In-bounds lane mask for the (possibly partial) boundary tile.  This lets
    # us skip any HBM-side pad/copy of logits and labels entirely.
    lane = lax.broadcasted_iota(jnp.int32, (1, 1, tile), 2)
    in_bounds = (k * tile + lane) < hw                      # (1,1,T) bool

    # Sanitize out-of-bounds logits (boundary-block contents are undefined);
    # their contributions are zeroed via the pixel mask below anyway.
    logits = jnp.where(in_bounds, pred_ref[...].astype(jnp.float32), 0.0)  # (1,C,T)
    tgt = tgt_ref[...]                                      # (1,1,T) int32

    valid = (tgt != ignore_index) & in_bounds               # (1,1,T)
    maskf = valid.astype(jnp.float32)
    tgt_c = jnp.where(valid, tgt, 0)

    # numerically stable softmax pieces over the class axis (axis=1)
    m = jnp.max(logits, axis=1, keepdims=True)              # (1,1,T)
    e = jnp.exp(logits - m)                                 # (1,C,T)
    denom = jnp.sum(e, axis=1, keepdims=True)               # (1,1,T)
    # one reciprocal per pixel instead of C divides per pixel (exact -> 1e-5 match)
    inv_denom = pl.reciprocal(denom, approx=False)

    c_iota = lax.broadcasted_iota(jnp.int32, logits.shape, 1)
    one_hot = (c_iota == tgt_c).astype(jnp.float32)         # (1,C,T)

    if mode == "micro_fast":
        # weight=None: softmax rows sum to 1, so cardinality = 2 * #valid and
        # the intersection only needs the softmax probability at the label.
        e_at_label = jnp.sum(e * one_hot, axis=1, keepdims=True)   # (1,1,T)
        inter_ref[...] += jnp.sum(maskf * e_at_label * inv_denom)
        card_ref[...] += 2.0 * jnp.sum(maskf)
    elif mode == "micro_weighted":
        # mirrors the PyTorch math exactly, including w^2 in the intersection.
        w = w_ref[...].astype(jnp.float32)                  # (1,C)
        wv = w.reshape(1, w.shape[1], 1)                    # (1,C,1)
        soft_w = e * inv_denom * maskf * wv                 # (1,C,T)
        oh_w = one_hot * maskf * wv                         # (1,C,T)
        inter_ref[...] += jnp.sum(soft_w * oh_w)
        card_ref[...] += jnp.sum(soft_w) + jnp.sum(oh_w)
    else:  # 'macro': per-class sums, weights applied only at finalize.
        soft = e * inv_denom * maskf                        # (1,C,T)
        oh = one_hot * maskf                                # (1,C,T)
        inter_ref[...] += jnp.sum(soft * oh, axis=2)        # (1,C)
        card_ref[...] += jnp.sum(soft, axis=2) + jnp.sum(oh, axis=2)

    @pl.when(k == nk - 1)
    def _finalize():
        dice = 2.0 * inter_ref[...] * pl.reciprocal(card_ref[...] + eps, approx=False)
        if mode == "macro":
            w = w_ref[...].astype(jnp.float32)               # (1,C)
            loss = jnp.sum((1.0 - dice) * w) / jnp.sum(w)
            out_ref[...] = loss.reshape(1, 1, 1)
        else:
            out_ref[...] = (1.0 - dice).reshape(1, 1, 1)


def dice_loss_pallas(pred, target, *, average="micro", eps=1e-8,
                     weight=None, ignore_index=-100, tile_hw=None):
    assert average in ("micro", "macro"), f"unknown average: {average}"
    N, C, H, W = pred.shape
    HW = H * W

    # Effective ignore value (targets are 0..C-1, so -100 is a safe "never").
    ii = -100 if ignore_index is None else int(ignore_index)

    itemsize = jnp.dtype(pred.dtype).itemsize
    tile = _choose_tile(HW, C, itemsize, tile_hw)
    num_k = pl.cdiv(HW, tile)

    # Logits keep their HBM dtype (bf16 stays bf16); reshape is copy-free.
    pred_r = pred.reshape(N, C, HW)
    tgt_r = target.astype(jnp.int32).reshape(N, 1, HW)

    has_weight = weight is not None
    if has_weight:
        w_r = jnp.asarray(weight, jnp.float32).reshape(1, C)
    else:
        w_r = jnp.ones((1, C), jnp.float32)

    if average == "macro":
        mode = "macro"
        acc_shape = (1, C)          # per-class accumulators
    elif has_weight:
        mode = "micro_weighted"
        acc_shape = (1, 1)
    else:
        mode = "micro_fast"
        acc_shape = (1, 1)

    kernel = functools.partial(_dice_kernel, eps=float(eps), ignore_index=ii,
                               hw=HW, tile=tile, mode=mode)

    per_batch = pl.pallas_call(
        kernel,
        out_shape=jax.ShapeDtypeStruct((N, 1, 1), jnp.float32),
        grid_spec=pltpu.PrefetchScalarGridSpec(
            num_scalar_prefetch=0,
            grid=(N, num_k),                                   # reduction axis last
            in_specs=[
                pl.BlockSpec((1, C, tile), lambda b, k: (b, 0, k)),
                pl.BlockSpec((1, 1, tile), lambda b, k: (b, 0, k)),
                pl.BlockSpec((1, C), lambda b, k: (0, 0)),
            ],
            out_specs=pl.BlockSpec((1, 1, 1), lambda b, k: (b, 0, 0)),
            scratch_shapes=[
                pltpu.VMEM(acc_shape, jnp.float32),            # intersection acc
                pltpu.VMEM(acc_shape, jnp.float32),            # cardinality acc
            ],
        ),
        compiler_params=pltpu.CompilerParams(
            dimension_semantics=("parallel", "arbitrary"),     # batch on both TCs (v7x)
            vmem_limit_bytes=32 * 1024 * 1024,
        ),
    )(pred_r, tgt_r, w_r)

    return jnp.mean(per_batch)


class DiceLoss:
    """JAX/Pallas equivalent of the PyTorch DiceLoss module."""

    def __init__(self, average="micro", eps=1e-8, weight=None, ignore_index=-100,
                 tile_hw=None):
        self.average = average
        self.eps = eps
        self.weight = weight
        self.ignore_index = ignore_index
        self.tile_hw = tile_hw

    def __call__(self, pred, target):
        return dice_loss_pallas(pred, target, average=self.average, eps=self.eps,
                                weight=self.weight, ignore_index=self.ignore_index,
                                tile_hw=self.tile_hw)


def _dice_loss_ref(pred, target, average="micro", eps=1e-8, weight=None,
                   ignore_index=-100):
    """Pure-JAX reference mirroring the PyTorch semantics."""
    N, C, H, W = pred.shape
    soft = jax.nn.softmax(pred.astype(jnp.float32), axis=1)
    if ignore_index is None:
        valid = jnp.ones_like(target, dtype=bool)
    else:
        valid = target != ignore_index
    tgt = jnp.where(valid, target, 0)
    one_hot = jax.nn.one_hot(tgt, C, dtype=jnp.float32, axis=1)   # (N,C,H,W)
    maskf = valid.astype(jnp.float32)[:, None]
    one_hot = one_hot * maskf
    soft = soft * maskf
    w = jnp.ones((C,), jnp.float32) if weight is None else jnp.asarray(weight, jnp.float32)
    if average == "micro":
        wv = w.reshape(1, C, 1, 1)
        soft_w = soft * wv
        oh_w = one_hot * wv
        inter = jnp.sum(soft_w * oh_w, axis=(1, 2, 3))
        card = jnp.sum(soft_w + oh_w, axis=(1, 2, 3))
        loss = 1.0 - 2.0 * inter / (card + eps)                   # (N,)
    else:
        inter = jnp.sum(soft * one_hot, axis=(2, 3))               # (N,C)
        card = jnp.sum(soft + one_hot, axis=(2, 3))
        loss_c = 1.0 - 2.0 * inter / (card + eps)                  # (N,C)
        loss = jnp.sum(loss_c * w.reshape(1, C), axis=-1) / jnp.sum(w)
    return jnp.mean(loss)


if __name__ == "__main__":
    key = jax.random.PRNGKey(0)
    k_pred, k_tgt, k_pred2, k_tgt2 = jax.random.split(key, 4)

    # Test 1: f32 logits, aligned spatial size, forced multi-tile spatial loop.
    N, C, H, W = 2, 4, 16, 16
    pred = jax.random.normal(k_pred, (N, C, H, W), dtype=jnp.float32)
    target = jax.random.randint(k_tgt, (N, H, W), 0, C, dtype=jnp.int32)
    target = target.at[0, 0, :3].set(-100)          # exercise ignore_index

    ref = _dice_loss_ref(pred, target)
    loss_tiled = jax.block_until_ready(dice_loss_pallas(pred, target, tile_hw=128))
    assert jnp.allclose(loss_tiled, ref, atol=1e-5, rtol=1e-5), (loss_tiled, ref)

    criterion = DiceLoss()                          # auto tile (single spatial tile)
    loss_auto = jax.block_until_ready(criterion(pred, target))
    assert jnp.allclose(loss_auto, ref, atol=1e-5, rtol=1e-5), (loss_auto, ref)

    # Test 2: bf16 logits + ragged spatial size (exercises the partial boundary
    # tile / in-kernel bounds masking with no HBM pad copy).
    N2, C2, H2, W2 = 3, 5, 13, 17
    pred_bf16 = jax.random.normal(k_pred2, (N2, C2, H2, W2),
                                  dtype=jnp.float32).astype(jnp.bfloat16)
    target2 = jax.random.randint(k_tgt2, (N2, H2, W2), 0, C2, dtype=jnp.int32)
    target2 = target2.at[1, :2, :].set(-100)

    loss_bf16 = jax.block_until_ready(dice_loss_pallas(pred_bf16, target2, tile_hw=128))
    ref_bf16 = _dice_loss_ref(pred_bf16.astype(jnp.float32), target2)
    assert jnp.allclose(loss_bf16, ref_bf16, atol=1e-4, rtol=1e-4), (loss_bf16, ref_bf16)

    # Test 3: class-weighted 'micro' path.
    w = jnp.array([0.5, 1.0, 2.0, 1.5], jnp.float32)
    loss_w = jax.block_until_ready(dice_loss_pallas(pred, target, weight=w, tile_hw=128))
    ref_w = _dice_loss_ref(pred, target, weight=w)
    assert jnp.allclose(loss_w, ref_w, atol=1e-5, rtol=1e-5), (loss_w, ref_w)

    # Test 4: 'macro' average, with and without class weights, ragged + bf16.
    loss_mac = jax.block_until_ready(
        dice_loss_pallas(pred, target, average="macro", weight=w, tile_hw=128))
    ref_mac = _dice_loss_ref(pred, target, average="macro", weight=w)
    assert jnp.allclose(loss_mac, ref_mac, atol=1e-5, rtol=1e-5), (loss_mac, ref_mac)

    loss_mac2 = jax.block_until_ready(
        dice_loss_pallas(pred_bf16, target2, average="macro", tile_hw=128))
    ref_mac2 = _dice_loss_ref(pred_bf16.astype(jnp.float32), target2, average="macro")
    assert jnp.allclose(loss_mac2, ref_mac2, atol=1e-4, rtol=1e-4), (loss_mac2, ref_mac2)

    print("KERNEL_OK")
</pallas_src>

<mosaic_0001>
module attributes {stable_mosaic.version = 11 : i64} {
  func.func @_dice_kernel(%arg0: i32, %arg1: i32, %arg2: memref<1x4x128xf32, #tpu.memory_space<vmem>>, %arg3: memref<1x1x128xi32, #tpu.memory_space<vmem>>, %arg4: memref<1x4xf32, #tpu.memory_space<vmem>>, %arg5: memref<1x1x1xf32, #tpu.memory_space<vmem>>, %arg6: memref<1x1xf32, #tpu.memory_space<vmem>>, %arg7: memref<1x1xf32, #tpu.memory_space<vmem>>) attributes {dimension_semantics = [#tpu.dimension_semantics<parallel>, #tpu.dimension_semantics<arbitrary>], iteration_bounds = array<i64: 2, 2>, scalar_prefetch = 0 : i64, scratch_operands = 2 : i64, tpu.core_type = #tpu.core_type<tc>, window_params = [{transform_indices = @transform_0, window_bounds = array<i64: 1, 4, 128>}, {transform_indices = @transform_1, window_bounds = array<i64: 1, 1, 128>}, {pipeline_mode = #tpu.pipeline_mode<synchronous>, transform_indices = @transform_2, window_bounds = array<i64: 1, 4>}, {transform_indices = @transform_3, window_bounds = array<i64: 1, 1, 1>}]} {
    %c0_i32 = arith.constant 0 : i32
    %0 = arith.cmpi eq, %arg1, %c0_i32 : i32
    %1 = arith.extui %0 : i1 to i32
    %c0_i32_0 = arith.constant 0 : i32
    %2 = arith.cmpi ne, %1, %c0_i32_0 : i32
    scf.if %2 {
      %cst_22 = arith.constant 0.000000e+00 : f32
      %60 = vector.broadcast %cst_22 : f32 to vector<1x1xf32>
      %c0_23 = arith.constant 0 : index
      %c0_24 = arith.constant 0 : index
      %61 = vector.load %arg6[%c0_23, %c0_24] : memref<1x1xf32, #tpu.memory_space<vmem>>, vector<1x1xf32>
      tpu.vector_store %arg6[%c0_23, %c0_24], %60 {strides = array<i32>} : memref<1x1xf32, #tpu.memory_space<vmem>>, vector<1x1xf32>,
      %cst_25 = arith.constant 0.000000e+00 : f32
      %62 = vector.broadcast %cst_25 : f32 to vector<1x1xf32>
      %c0_26 = arith.constant 0 : index
      %c0_27 = arith.constant 0 : index
      %63 = vector.load %arg7[%c0_26, %c0_27] : memref<1x1xf32, #tpu.memory_space<vmem>>, vector<1x1xf32>
      tpu.vector_store %arg7[%c0_26, %c0_27], %62 {strides = array<i32>} : memref<1x1xf32, #tpu.memory_space<vmem>>, vector<1x1xf32>,
    } else {
    }
    %3 = tpu.iota {dimensions = array<i32: 2>} : vector<1x1x128xi32>
    %c128_i32 = arith.constant 128 : i32
    %4 = arith.muli %arg1, %c128_i32 : i32
    %5 = vector.broadcast %4 : i32 to vector<1x1x128xi32>
    %6 = arith.addi %5, %3 : vector<1x1x128xi32>
    %c256_i32 = arith.constant 256 : i32
    %7 = vector.broadcast %c256_i32 : i32 to vector<1x1x128xi32>
    %8 = arith.cmpi slt, %6, %7 : vector<1x1x128xi32>
    %c0 = arith.constant 0 : index
    %c0_1 = arith.constant 0 : index
    %c0_2 = arith.constant 0 : index
    %9 = vector.load %arg2[%c0, %c0_1, %c0_2] : memref<1x4x128xf32, #tpu.memory_space<vmem>>, vector<1x4x128xf32>
    %cst = arith.constant 0.000000e+00 : f32
    %10 = vector.shape_cast %8 : vector<1x1x128xi1> to vector<1x1x128xi1>
    %11 = vector.broadcast %10 : vector<1x1x128xi1> to vector<1x4x128xi1>
    %12 = vector.broadcast %cst : f32 to vector<1x4x128xf32>
    %13 = arith.select %11, %9, %12 : vector<1x4x128xi1>, vector<1x4x128xf32>
    %c0_3 = arith.constant 0 : index
    %c0_4 = arith.constant 0 : index
    %c0_5 = arith.constant 0 : index
    %14 = vector.load %arg3[%c0_3, %c0_4, %c0_5] : memref<1x1x128xi32, #tpu.memory_space<vmem>>, vector<1x1x128xi32>
    %c-100_i32 = arith.constant -100 : i32
    %15 = vector.broadcast %c-100_i32 : i32 to vector<1x1x128xi32>
    %16 = arith.cmpi ne, %14, %15 : vector<1x1x128xi32>
    %17 = arith.andi %16, %8 : vector<1x1x128xi1>
    %18 = arith.extui %17 : vector<1x1x128xi1> to vector<1x1x128xi32>
    %19 = arith.sitofp %18 : vector<1x1x128xi32> to vector<1x1x128xf32>
    %c0_i32_6 = arith.constant 0 : i32
    %20 = vector.broadcast %c0_i32_6 : i32 to vector<1x1x128xi32>
    %21 = arith.select %17, %14, %20 : vector<1x1x128xi1>, vector<1x1x128xi32>
    %cst_7 = arith.constant dense<0xFF800000> : vector<1x128xf32>
    %22 = vector.multi_reduction <maximumf>, %13, %cst_7 [1] : vector<1x4x128xf32> to vector<1x128xf32>
    %23 = vector.shape_cast %22 : vector<1x128xf32> to vector<1x1x128xf32>
    %24 = vector.broadcast %23 : vector<1x1x128xf32> to vector<1x4x128xf32>
    %25 = arith.subf %13, %24 : vector<1x4x128xf32>
    %26 = math.exp %25 : vector<1x4x128xf32>
    %cst_8 = arith.constant dense<0.000000e+00> : vector<1x128xf32>
    %27 = vector.multi_reduction <add>, %26, %cst_8 [1] : vector<1x4x128xf32> to vector<1x128xf32>
    %28 = vector.shape_cast %27 : vector<1x128xf32> to vector<1x1x128xf32>
    %29 = tpu.reciprocal %28 : vector<1x1x128xf32> -> vector<1x1x128xf32>
    %30 = tpu.iota {dimensions = array<i32: 1>} : vector<1x4x128xi32>
    %31 = vector.broadcast %21 : vector<1x1x128xi32> to vector<1x4x128xi32>
    %32 = arith.cmpi eq, %30, %31 : vector<1x4x128xi32>
    %33 = arith.extui %32 : vector<1x4x128xi1> to vector<1x4x128xi32>
    %34 = arith.sitofp %33 : vector<1x4x128xi32> to vector<1x4x128xf32>
    %35 = arith.mulf %26, %34 : vector<1x4x128xf32>
    %cst_9 = arith.constant dense<0.000000e+00> : vector<1x128xf32>
    %36 = vector.multi_reduction <add>, %35, %cst_9 [1] : vector<1x4x128xf32> to vector<1x128xf32>
    %37 = vector.shape_cast %36 : vector<1x128xf32> to vector<1x1x128xf32>
    %c0_10 = arith.constant 0 : index
    %c0_11 = arith.constant 0 : index
    %38 = vector.load %arg6[%c0_10, %c0_11] : memref<1x1xf32, #tpu.memory_space<vmem>>, vector<1x1xf32>
    %39 = arith.mulf %19, %37 : vector<1x1x128xf32>
    %40 = arith.mulf %39, %29 : vector<1x1x128xf32>
    %41 = vector.shape_cast %40 : vector<1x1x128xf32> to vector<1x1x1x128xf32>
    %cst_12 = arith.constant dense<0.000000e+00> : vector<1xf32>
    %42 = vector.multi_reduction <add>, %41, %cst_12 [1, 2, 3] : vector<1x1x1x128xf32> to vector<1xf32>
    %43 = vector.shape_cast %42 : vector<1xf32> to vector<1x1x1x1xf32>
    %44 = vector.extract %43[0, 0, 0, 0] : f32 from vector<1x1x1x1xf32>
    %45 = vector.broadcast %44 : f32 to vector<1x1xf32>
    %46 = arith.addf %38, %45 : vector<1x1xf32>
    %c0_13 = arith.constant 0 : index
    %c0_14 = arith.constant 0 : index
    %47 = vector.load %arg6[%c0_13, %c0_14] : memref<1x1xf32, #tpu.memory_space<vmem>>, vector<1x1xf32>
    tpu.vector_store %arg6[%c0_13, %c0_14], %46 {strides = array<i32>} : memref<1x1xf32, #tpu.memory_space<vmem>>, vector<1x1xf32>,
    %c0_15 = arith.constant 0 : index
    %c0_16 = arith.constant 0 : index
    %48 = vector.load %arg7[%c0_15, %c0_16] : memref<1x1xf32, #tpu.memory_space<vmem>>, vector<1x1xf32>
    %49 = vector.shape_cast %19 : vector<1x1x128xf32> to vector<1x1x1x128xf32>
    %cst_17 = arith.constant dense<0.000000e+00> : vector<1xf32>
    %50 = vector.multi_reduction <add>, %49, %cst_17 [1, 2, 3] : vector<1x1x1x128xf32> to vector<1xf32>
    %51 = vector.shape_cast %50 : vector<1xf32> to vector<1x1x1x1xf32>
    %52 = vector.extract %51[0, 0, 0, 0] : f32 from vector<1x1x1x1xf32>
    %cst_18 = arith.constant 2.000000e+00 : f32
    %53 = arith.mulf %cst_18, %52 : f32
    %54 = vector.broadcast %53 : f32 to vector<1x1xf32>
    %55 = arith.addf %48, %54 : vector<1x1xf32>
    %c0_19 = arith.constant 0 : index
    %c0_20 = arith.constant 0 : index
    %56 = vector.load %arg7[%c0_19, %c0_20] : memref<1x1xf32, #tpu.memory_space<vmem>>, vector<1x1xf32>
    tpu.vector_store %arg7[%c0_19, %c0_20], %55 {strides = array<i32>} : memref<1x1xf32, #tpu.memory_space<vmem>>, vector<1x1xf32>,
    %c1_i32 = arith.constant 1 : i32
    %57 = arith.cmpi eq, %arg1, %c1_i32 : i32
    %58 = arith.extui %57 : i1 to i32
    %c0_i32_21 = arith.constant 0 : i32
    %59 = arith.cmpi ne, %58, %c0_i32_21 : i32
    scf.if %59 {
      %c0_22 = arith.constant 0 : index
      %c0_23 = arith.constant 0 : index
      %60 = vector.load %arg6[%c0_22, %c0_23] : memref<1x1xf32, #tpu.memory_space<vmem>>, vector<1x1xf32>
      %cst_24 = arith.constant 2.000000e+00 : f32
      %61 = vector.broadcast %cst_24 : f32 to vector<1x1xf32>
      %62 = arith.mulf %61, %60 : vector<1x1xf32>
      %c0_25 = arith.constant 0 : index
      %c0_26 = arith.constant 0 : index
      %63 = vector.load %arg7[%c0_25, %c0_26] : memref<1x1xf32, #tpu.memory_space<vmem>>, vector<1x1xf32>
      %cst_27 = arith.constant 9.99999993E-9 : f32
      %64 = vector.broadcast %cst_27 : f32 to vector<1x1xf32>
      %65 = arith.addf %63, %64 : vector<1x1xf32>
      %66 = tpu.reciprocal %65 : vector<1x1xf32> -> vector<1x1xf32>
      %67 = arith.mulf %62, %66 : vector<1x1xf32>
      %cst_28 = arith.constant 1.000000e+00 : f32
      %68 = vector.broadcast %cst_28 : f32 to vector<1x1xf32>
      %69 = arith.subf %68, %67 : vector<1x1xf32>
      %70 = vector.shape_cast %69 : vector<1x1xf32> to vector<1x1x1xf32>
      %c0_29 = arith.constant 0 : index
      %c0_30 = arith.constant 0 : index
      %c0_31 = arith.constant 0 : index
      %71 = vector.load %arg5[%c0_29, %c0_30, %c0_31] : memref<1x1x1xf32, #tpu.memory_space<vmem>>, vector<1x1x1xf32>
      tpu.vector_store %arg5[%c0_29, %c0_30, %c0_31], %70 {strides = array<i32>} : memref<1x1x1xf32, #tpu.memory_space<vmem>>, vector<1x1x1xf32>,
    } else {
    }
    return
  }
  func.func @transform_0(%arg0: i32, %arg1: i32) -> (i32, i32, i32) {
    %c0_i32 = arith.constant 0 : i32
    %c0_i32_0 = arith.constant 0 : i32
    return %arg0, %c0_i32, %arg1 : i32, i32, i32
  }
  func.func @transform_1(%arg0: i32, %arg1: i32) -> (i32, i32, i32) {
    %c0_i32 = arith.constant 0 : i32
    %c0_i32_0 = arith.constant 0 : i32
    return %arg0, %c0_i32, %arg1 : i32, i32, i32
  }
  func.func @transform_2(%arg0: i32, %arg1: i32) -> (i32, i32) {
    %c0_i32 = arith.constant 0 : i32
    %c0_i32_0 = arith.constant 0 : i32
    %c0_i32_1 = arith.constant 0 : i32
    return %c0_i32, %c0_i32_0 : i32, i32
  }
  func.func @transform_3(%arg0: i32, %arg1: i32) -> (i32, i32, i32) {
    %c0_i32 = arith.constant 0 : i32
    %c0_i32_0 = arith.constant 0 : i32
    %c0_i32_1 = arith.constant 0 : i32
    return %arg0, %c0_i32, %c0_i32_0 : i32, i32, i32
  }
}

</mosaic_0001>

<llo_original>
// kernel: tpu_custom_call.1
$region0: #{tpu_custom_call.1}
  #allocation0 [shape = 'u32[]', space=smem, size = 0x4, offset = 0x4, fixed_abs, tag = 'smem constant byte address 0x4 - core index']
  #allocation1 [shape = 'u32[144,128]{1,0:T(1,128)}', space=vmem, size = 0x12000, scoped, tag = 'internal scratch']
  #allocation2 [shape = 'f32[1,1]{1,0:T(1,128)}', space=vmem, size = 0x200, scoped, tag = 'scratch operand']
  #allocation3 [shape = 'f32[1,1]{1,0:T(1,128)}', space=vmem, size = 0x200, scoped, tag = 'scratch operand']
  %s0 = inlined_call_operand.hbm [shape: f32[2,4,256], index: 0, kind: input, shape index: {}]
  %s1 = inlined_call_operand.hbm [shape: s32[2,1,256], index: 1, kind: input, shape index: {}]
  %s2 = inlined_call_operand.vmem [shape: f32[1,4], index: 2, kind: input, shape index: {}]
  %s3 = inlined_call_operand.vmem [shape: f32[2,1,1], index: 3, kind: output, shape index: {}]
  %s4 = sld [smem:[#allocation0]]
  $region61: #{tpu_custom_call.1} parent=0
    _
  %s6 = ssub.s32 1, %s4
  %s7 = scalar_select 0, %s6, %s4
  $region1: #{tpu_custom_call.1} parent=0
    #allocation4 [shape = 'u8[4096]{0}', space=vmem, size = 0x1000, scoped, tag = 'input window, operand 0']
    #allocation5 [shape = 's32[2]{0}', space=sflag, size = 0x8, scoped, tag = 'scoped memory for tpu_custom_call.1']
    #allocation6 [shape = 'u8[1024]{0}', space=vmem, size = 0x400, scoped, tag = 'input window, operand 1']
    #allocation7 [shape = 's32[2]{0}', space=sflag, size = 0x8, scoped, tag = 'scoped memory for tpu_custom_call.1']
    %8 = vsyncpa [#allocation5], 0
    %s9 = scalar_lea.sflag [#allocation5], 1
    %10 = vsyncpa %s9, 0
    %11 = vsyncpa [#allocation7], 0
    %s12 = scalar_lea.sflag [#allocation7], 1
    %13 = vsyncpa %s12, 0
    loop: start=0, step=1, limit=6
    $region2: #{tpu_custom_call.1} parent=1 // loop_pre_header
      _
    $region3: #{tpu_custom_call.1} parent=1 // loop_header
      %s15 = sphi 0, %s19
      %p16 = scmp.ge.s32.totalorder %s15, 6
      %s22 = sphi 0, %s34
      %s23 = sphi 0, %s30
      %s24 = sphi 0, %s22
      %s25 = sphi 0, %s23
      %s26 = sphi 0, %s24
      %s27 = sphi 0, %s25
      %s39 = sphi 0, %s41
      %s42 = sphi 0, %s39
      %s43 = sphi 0, %s42
      %s59 = sphi 0, %s43
      %s67 = sphi 0, %s69
      %s70 = sphi 0, %s67
      %s71 = sphi 0, %s70
      %s87 = sphi 0, %s71
      %s91 = sphi 0, %s91
      %s93 = sphi 0, %s91
      %s94 = sphi 0, %s93
      %s108 = sphi 0, %s94
      %s114 = sphi 0, %s116
      %s117 = sphi 0, %s114
      %s118 = sphi 0, %s117
      %s134 = sphi 0, %s118
    $region4: #{tpu_custom_call.1} parent=1 // loop_header_branch
      %18 = sbr.rel (%p16) target = $region8
    $region5: #{tpu_custom_call.1} parent=1 // loop_body
      %s20 = ssub.s32 %s15, 1
      %s21 = ssub.s32 %s15, 2
      %s28 = sadd.s32 1, %s23
      %p29 = scmp.ge.s32.totalorder %s28, 2
      %s30 = scalar_select %p29, 0, %s28
      %s31 = sadd.s32 1, %s22
      %s32 = scalar_select %p29, %s31, %s22
      %p33 = scmp.ge.s32.totalorder %s32, 2
      %s34 = scalar_select %p33, 0, %s32
      %s35 = ssub.s32 %s22, %s34
      %s36 = ssub.s32 %s23, %s30
      %s37 = sor.u32 %s35, %s36
      %p38 = scmp.eq.s32.totalorder %s37, 0
      %s40 = sadd.s32 %s39, 1
      %s41 = scalar_select %p38, %s39, %s40
      %p44 = pneg %p38
      %p45 = scmp.eq.s32.totalorder %s15, 3
      %p46 = por %p44, %p45
      %p47 = scmp.ne.s32.totalorder %s39, %s42
      %p48 = scmp.eq.s32.totalorder %s15, 0
      %p49 = por %p47, %p48
      %p50 = scmp.ne.s32.totalorder %s39, %s42
      %p51 = scmp.eq.s32.totalorder %s20, 3
      %p52 = por %p50, %p51
      %p53 = scmp.ne.s32.totalorder %s42, %s43
      %p54 = scmp.eq.s32.totalorder %s20, 0
      %p55 = por %p53, %p54
      %p56 = scmp.ne.s32.totalorder %s42, %s43
      %p57 = scmp.eq.s32.totalorder %s21, 3
      %p58 = por %p56, %p57
      %p60 = scmp.ne.s32.totalorder %s43, %s59
      %p61 = scmp.eq.s32.totalorder %s21, 0
      %p62 = por %p60, %p61
      %s63 = ssub.s32 %s22, %s34
      %s64 = ssub.s32 %s23, %s30
      %s65 = sor.u32 %s63, %s64
      %p66 = scmp.eq.s32.totalorder %s65, 0
      %s68 = sadd.s32 %s67, 1
      %s69 = scalar_select %p66, %s67, %s68
      %p72 = pneg %p66
      %p73 = scmp.eq.s32.totalorder %s15, 3
      %p74 = por %p72, %p73
      %p75 = scmp.ne.s32.totalorder %s67, %s70
      %p76 = scmp.eq.s32.totalorder %s15, 0
      %p77 = por %p75, %p76
      %p78 = scmp.ne.s32.totalorder %s67, %s70
      %p79 = scmp.eq.s32.totalorder %s20, 3
      %p80 = por %p78, %p79
      %p81 = scmp.ne.s32.totalorder %s70, %s71
      %p82 = scmp.eq.s32.totalorder %s20, 0
      %p83 = por %p81, %p82
      %p84 = scmp.ne.s32.totalorder %s70, %s71
      %p85 = scmp.eq.s32.totalorder %s21, 3
      %p86 = por %p84, %p85
      %p88 = scmp.ne.s32.totalorder %s71, %s87
      %p89 = scmp.eq.s32.totalorder %s21, 0
      %p90 = por %p88, %p89
      %s92 = sadd.s32 %s91, 1
      %p95 = scmp.eq.s32.totalorder %s15, 3
      %p96 = scmp.ne.s32.totalorder %s91, %s93
      %p97 = scmp.eq.s32.totalorder %s15, 0
      %p98 = por %p96, %p97
      %p99 = scmp.ne.s32.totalorder %s91, %s93
      %p100 = scmp.eq.s32.totalorder %s20, 3
      %p101 = por %p99, %p100
      %p102 = scmp.ne.s32.totalorder %s93, %s94
      %p103 = scmp.eq.s32.totalorder %s20, 0
      %p104 = por %p102, %p103
      %p105 = scmp.ne.s32.totalorder %s93, %s94
      %p106 = scmp.eq.s32.totalorder %s21, 3
      %p107 = por %p105, %p106
      %p109 = scmp.ne.s32.totalorder %s94, %s108
      %p110 = scmp.eq.s32.totalorder %s21, 0
      %p111 = por %p109, %p110
      %s112 = ssub.s32 %s22, %s34
      %p113 = scmp.eq.s32.totalorder %s112, 0
      %s115 = sadd.s32 %s114, 1
      %s116 = scalar_select %p113, %s114, %s115
      %p119 = pneg %p113
      %p120 = scmp.eq.s32.totalorder %s15, 3
      %p121 = por %p119, %p120
      %p122 = scmp.ne.s32.totalorder %s114, %s117
      %p123 = scmp.eq.s32.totalorder %s15, 0
      %p124 = por %p122, %p123
      %p125 = scmp.ne.s32.totalorder %s114, %s117
      %p126 = scmp.eq.s32.totalorder %s20, 3
      %p127 = por %p125, %p126
      %p128 = scmp.ne.s32.totalorder %s117, %s118
      %p129 = scmp.eq.s32.totalorder %s20, 0
      %p130 = por %p128, %p129
      %p131 = scmp.ne.s32.totalorder %s117, %s118
      %p132 = scmp.eq.s32.totalorder %s21, 3
      %p133 = por %p131, %p132
      %p135 = scmp.ne.s32.totalorder %s118, %s134
      %p136 = scmp.eq.s32.totalorder %s21, 0
      %p137 = por %p135, %p136
      %p138 = scmp.le.s32.totalorder 1, %s15
      %p139 = scmp.lt.s32.totalorder %s15, 5
      %p140 = pnand %p138, %p139
      %p141 = pneg %p140
      // Predicated region
      $region9: #{tpu_custom_call.1} parent=5 // pred_check
        _
      $region10: #{tpu_custom_call.1} parent=5 // pred_check_branch
        %143 = sbr.rel (%p140) target = $region12
      $region11: #{tpu_custom_call.1} parent=5 // pred_region
        %s144 = ssub.s32 %s15, 1
        // Predicated region
        $region13: #{tpu_custom_call.1} parent=11 // pred_check
          %p145 = pneg %p104
        $region14: #{tpu_custom_call.1} parent=11 // pred_check_branch
          %147 = sbr.rel (%p145) target = $region16
        $region15: #{tpu_custom_call.1} parent=11 // pred_region
          _
        $region16: #{tpu_custom_call.1} parent=11 // pred_fallthru
          _
      $region12: #{tpu_custom_call.1} parent=5 // pred_fallthru
        _
      %p148 = scmp.lt.s32.totalorder %s15, 4
      // Predicated region
      $region17: #{tpu_custom_call.1} parent=5 // pred_check
        %p149 = pneg %p148
      $region18: #{tpu_custom_call.1} parent=5 // pred_check_branch
        %151 = sbr.rel (%p149) target = $region20
      $region19: #{tpu_custom_call.1} parent=5 // pred_region
        // Predicated region
        $region21: #{tpu_custom_call.1} parent=19 // pred_check
          %p152 = pneg %p49
        $region22: #{tpu_custom_call.1} parent=19 // pred_check_branch
          %154 = sbr.rel (%p152) target = $region24
        $region23: #{tpu_custom_call.1} parent=19 // pred_region
          %s155 = sand.u32 %s39, 1
          %s156 = scalar_lea.sflag [#allocation5], %s155
          %s157 = sand.u32 %s39, 1
          %s158 = smul.addr %s157, 4
          %s159 = scalar_lea.vmem [#allocation4], %s158
          %s161 = ssub.s32 64, 64
          %162 = vsyncadd %s156, %s161
          %s163 = smul.addr %s22, 2
          %s164 = sadd.s32 %s23, %s163
          %s165 = smul.addr %s164, 64
          %s166 = scalar_lea.hbm %s0, %s165
          %s168 = sshll.u32 %s159, 4
          %s169 = int_to_ptr.vmem [resolvable:$true] %s168
          %171 = dma.hbm_to_vmem [thread:$0]  %s166, 64, %s169, %s156
        $region24: #{tpu_custom_call.1} parent=19 // pred_fallthru
          _
        // Predicated region
        $region25: #{tpu_custom_call.1} parent=19 // pred_check
          %p172 = pneg %p77
        $region26: #{tpu_custom_call.1} parent=19 // pred_check_branch
          %174 = sbr.rel (%p172) target = $region28
        $region27: #{tpu_custom_call.1} parent=19 // pred_region
          %s175 = sand.u32 %s67, 1
          %s176 = scalar_lea.sflag [#allocation7], %s175
          %s177 = sand.u32 %s67, 1
          %s178 = scalar_lea.vmem [#allocation6], %s177
          %s180 = ssub.s32 16, 16
          %181 = vsyncadd %s176, %s180
          %s182 = smul.addr %s22, 2
          %s183 = sadd.s32 %s23, %s182
          %s184 = smul.addr %s183, 16
          %s185 = scalar_lea.hbm %s1, %s184
          %s187 = sshll.u32 %s178, 4
          %s188 = int_to_ptr.vmem [resolvable:$true] %s187
          %190 = dma.hbm_to_vmem [thread:$0]  %s185, 16, %s188, %s176
        $region28: #{tpu_custom_call.1} parent=19 // pred_fallthru
          _
      $region20: #{tpu_custom_call.1} parent=5 // pred_fallthru
        _
      %p191 = scmp.le.s32.totalorder 1, %s15
      %p192 = scmp.lt.s32.totalorder %s15, 5
      %p193 = pnand %p191, %p192
      %p194 = pneg %p193
      // Predicated region
      $region29: #{tpu_custom_call.1} parent=5 // pred_check
        _
      $region30: #{tpu_custom_call.1} parent=5 // pred_check_branch
        %196 = sbr.rel (%p193) target = $region32
      $region31: #{tpu_custom_call.1} parent=5 // pred_region
        %s197 = ssub.s32 %s15, 1
        %s198 = sand.u32 %s42, 1
        %s199 = scalar_lea.sflag [#allocation5], %s198
        %s200 = sand.u32 %s42, 1
        %s201 = smul.addr %s200, 4
        %s202 = scalar_lea.vmem [#allocation4], %s201
        // Predicated region
        $region33: #{tpu_custom_call.1} parent=31 // pred_check
          %p203 = pneg %p55
        $region34: #{tpu_custom_call.1} parent=31 // pred_check_branch
          %205 = sbr.rel (%p203) target = $region36
        $region35: #{tpu_custom_call.1} parent=31 // pred_region
          %206 = dma.done %s199, 64
        $region36: #{tpu_custom_call.1} parent=31 // pred_fallthru
          _
        %s207 = sand.u32 %s70, 1
        %s208 = scalar_lea.sflag [#allocation7], %s207
        %s209 = sand.u32 %s70, 1
        %s210 = scalar_lea.vmem [#allocation6], %s209
        // Predicated region
        $region37: #{tpu_custom_call.1} parent=31 // pred_check
          %p211 = pneg %p83
        $region38: #{tpu_custom_call.1} parent=31 // pred_check_branch
          %213 = sbr.rel (%p211) target = $region40
        $region39: #{tpu_custom_call.1} parent=31 // pred_region
          %214 = dma.done %s208, 16
        $region40: #{tpu_custom_call.1} parent=31 // pred_fallthru
          _
        %s215 = sand.u32 %s42, 1
        %s216 = scalar_lea.sflag [#allocation5], %s215
        %s217 = sand.u32 %s42, 1
        %s218 = smul.addr %s217, 4
        %s219 = scalar_lea.vmem [#allocation4], %s218
        %p220 = pneg %p55
        %p221 = pneg %p52
        %s222 = sand.u32 %s70, 1
        %s223 = scalar_lea.sflag [#allocation7], %s222
        %s224 = sand.u32 %s70, 1
        %s225 = scalar_lea.vmem [#allocation6], %s224
        %p226 = pneg %p83
        %p227 = pneg %p80
        %p228 = pneg %p104
        %p229 = pneg %p101
        %p230 = pneg %p130
        %p231 = pneg %p127
        %p232 = scmp.lt.s32.totalorder %s24, 1
        %s233 = scalar_select %p232, %s24, 1
        %s234 = scalar_lea.vmem %s3, %s233
        %p235 = scmp.lt.s32.totalorder %s24, 1
        %s236 = scalar_select %p235, %s24, 1
        %s237 = scalar_lea.vmem %s3, %s236
        %p238 = scmp.eq.s32.totalorder %s25, 0
        // Predicated region
        $region41: #{tpu_custom_call.1} parent=31 // pred_check
          %p239 = pneg %p238
        $region42: #{tpu_custom_call.1} parent=31 // pred_check_branch
          %241 = sbr.rel (%p239) target = $region44
        $region43: #{tpu_custom_call.1} parent=31 // pred_region
          %vm242 = vcmask 0
          %243 = vst.msk [vmem:[#allocation2] sm:$0x1] %vm242, 0.0
          %244 = vst.msk [vmem:[#allocation3] sm:$0x1] %vm242, 0.0
        $region44: #{tpu_custom_call.1} parent=31 // pred_fallthru
          _
        %v245 = vlaneseq
        %v246 = vand.u32 %v245, 127
        %s247 = smul.u32 %s25, 128
        %v248 = vstv %s247
        %v249 = vadd.s32 %v248, %v246
        %vm250 = vcmp.lt.s32.totalorder %v249, 256
        %v251 = vld [vmem:[%s202] sm:$0xf]
        %v252 = vsel %vm250, 1, 0
        %vm253 = vcmp.eq.s32.totalorder %v252, 1
        %v254 = vsel %vm253, %v251, 0.0
        %v255 = vld [vmem:[%s210] sm:$0x1]
        %vm256 = vcmp.ne.s32.totalorder %v255, 4294967196
        %vm257 = vmand %vm256, %vm250
        %v258 = vsel %vm257, 1, 0
        %v259 = vcvt.s32.f32 %v258
        %v260 = vsel %vm257, %v255, 0
        %vm261 = vcmask 1043456
        %v262 = vsel %vm261, %v254, -inf
        %v263 = vrot.slane %v262, 4
        %v264 = vmax.f32 %v262, %v263
        %v265 = vrot.slane %v264, 2
        %v266 = vmax.f32 %v264, %v265
        %v267 = vrot.slane %v266, 1
        %v268 = vmax.f32 %v266, %v267
        %v269 = vsub.f32 %v254, %v268
        %v270 = vmul.f32 %v269, 1.442695
        %v271 = vpow.pop %v270
        %v272 = vsel %vm261, %v271, 0.0
        %v273 = vrot.slane %v272, 4
        %v274 = vadd.f32 %v272, %v273
        %v275 = vrot.slane %v274, 2
        %v276 = vadd.f32 %v274, %v275
        %v277 = vrot.slane %v276, 1
        %v278 = vadd.f32 %v276, %v277
        %v279 = vrcp.pop %v278
        %v280 = vlaneseq
        %v281 = vshrl.u32 %v280, 7
        %v282 = vlaneseq
        %v283 = vshrl.u32 %v282, 7
        %v284 = vsub.s32 0, %v283
        %v285 = vrot.slane %v260, %v284
        %vm286 = vcmp.eq.s32.totalorder %v281, %v285
        %v287 = vsel %vm286, 1, 0
        %v288 = vcvt.s32.f32 %v287
        %v289 = vmul.f32 %v271, %v288
        %v290 = vsel %vm261, %v289, 0.0
        %v291 = vrot.slane %v290, 4
        %v292 = vadd.f32 %v290, %v291
        %v293 = vrot.slane %v292, 2
        %v294 = vadd.f32 %v292, %v293
        %v295 = vrot.slane %v294, 1
        %v296 = vadd.f32 %v294, %v295
        %v297 = vld [vmem:[#allocation2] sm:$0x1]
        %v298 = vmul.f32 %v259, %v296
        %v299 = vmul.f32 %v298, %v279
        %vm300 = vcmask 1040384
        %v301 = vsel %vm300, %v299, 0.0
        %302 = vadd.xlane.f32.xlu0 %v301
        %v303 = vpop.xlane.xlu0 %302
        %v304 = vrot.slane %v303, 4
        %v305 = vadd.f32 %v303, %v304
        %v306 = vrot.slane %v305, 2
        %v307 = vadd.f32 %v305, %v306
        %v308 = vrot.slane %v307, 1
        %v309 = vadd.f32 %v307, %v308
        %s310 = vtos %v309
        %v311 = vstv %s310
        %v312 = vadd.f32 %v297, %v311
        %vm313 = vcmask 0
        %314 = vst.msk [vmem:[#allocation2] sm:$0x1] %vm313, %v312
        %v315 = vld [vmem:[#allocation3] sm:$0x1]
        %v316 = vsel %vm300, %v259, 0.0
        %317 = vadd.xlane.f32.xlu0 %v316
        %v318 = vpop.xlane.xlu0 %317
        %v319 = vrot.slane %v318, 4
        %v320 = vadd.f32 %v318, %v319
        %v321 = vrot.slane %v320, 2
        %v322 = vadd.f32 %v320, %v321
        %v323 = vrot.slane %v322, 1
        %v324 = vadd.f32 %v322, %v323
        %s325 = vtos %v324
        %s326 = smul.f32 %s325, 2.0
        %v327 = vstv %s326
        %v328 = vadd.f32 %v315, %v327
        %329 = vst.msk [vmem:[#allocation3] sm:$0x1] %vm313, %v328
        %p330 = scmp.eq.s32.totalorder %s25, 1
        // Predicated region
        $region45: #{tpu_custom_call.1} parent=31 // pred_check
          %p331 = pneg %p330
        $region46: #{tpu_custom_call.1} parent=31 // pred_check_branch
          %333 = sbr.rel (%p331) target = $region48
        $region47: #{tpu_custom_call.1} parent=31 // pred_region
          %v334 = vld [vmem:[#allocation2] sm:$0x1]
          %v335 = vmul.f32 %v334, 2.0
          %v336 = vld [vmem:[#allocation3] sm:$0x1]
          %v337 = vadd.f32 %v336, 1e-08
          %v338 = vrcp.pop %v337
          %v339 = vmul.f32 %v335, %v338
          %v340 = vsub.f32 1.0, %v339
          %341 = vst.msk [vmem:[%s237] sm:$0x1] %vm313, %v340
        $region48: #{tpu_custom_call.1} parent=31 // pred_fallthru
          _
        %p342 = scmp.lt.s32.totalorder %s24, 1
        %s343 = scalar_select %p342, %s24, 1
        %s344 = scalar_lea.vmem %s3, %s343
        // Predicated region
        $region49: #{tpu_custom_call.1} parent=31 // pred_check
          %p345 = pneg %p127
        $region50: #{tpu_custom_call.1} parent=31 // pred_check_branch
          %347 = sbr.rel (%p345) target = $region52
        $region51: #{tpu_custom_call.1} parent=31 // pred_region
          _
        $region52: #{tpu_custom_call.1} parent=31 // pred_fallthru
          _
      $region32: #{tpu_custom_call.1} parent=5 // pred_fallthru
        _
      %p348 = scmp.le.s32.totalorder 2, %s15
      // Predicated region
      $region53: #{tpu_custom_call.1} parent=5 // pred_check
        %p349 = pneg %p348
      $region54: #{tpu_custom_call.1} parent=5 // pred_check_branch
        %351 = sbr.rel (%p349) target = $region56
      $region55: #{tpu_custom_call.1} parent=5 // pred_region
        %s352 = ssub.s32 %s15, 2
        // Predicated region
        $region57: #{tpu_custom_call.1} parent=55 // pred_check
          %p353 = pneg %p133
        $region58: #{tpu_custom_call.1} parent=55 // pred_check_branch
          %355 = sbr.rel (%p353) target = $region60
        $region59: #{tpu_custom_call.1} parent=55 // pred_region
          %p356 = scmp.lt.s32.totalorder %s26, 1
          %s357 = scalar_select %p356, %s26, 1
          %s358 = scalar_lea.vmem %s3, %s357
        $region60: #{tpu_custom_call.1} parent=55 // pred_fallthru
          _
      $region56: #{tpu_custom_call.1} parent=5 // pred_fallthru
        _
    $region6: #{tpu_custom_call.1} parent=1 // loop_footer
      %s19 = sadd.s32 1, %s15
    $region7: #{tpu_custom_call.1} parent=1 // loop_footer_branch
      %14 = sbr.rel target = $region3
    $region8: #{tpu_custom_call.1} parent=1 // loop_exit
      _
    %359 = vsyncpa [#allocation5], 1
    %s360 = scalar_lea.sflag [#allocation5], 1
    %361 = vsyncpa %s360, 1
    %362 = vsyncpa [#allocation7], 1
    %s363 = scalar_lea.sflag [#allocation7], 1
    %364 = vsyncpa %s363, 1

</llo_original>
